<compile_context>
chip_gen: v5e
topology: v5e:2x2
jax: 0.10.0
libtpu: 0.0.40
codegen_flags: <defaults>
</compile_context>

<pallas_src>
import math

import jax
import jax.numpy as jnp
from jax.experimental import pallas as pl
from jax.experimental.pallas import tpu as pltpu


def _round_up(x, m):
    return ((x + m - 1) // m) * m


# ---------------------------------------------------------------------------
# Hardware detection (per-generation VMEM limit / tile defaults)
# ---------------------------------------------------------------------------
def _vmem_capacity_bytes():
    # Prefer the Pallas trace-time query; fall back to device_kind sniffing.
    try:
        info = pltpu.get_tpu_info()
        for name in ("vmem_capacity_bytes", "vmem_size_bytes", "vmem_bytes"):
            cap = getattr(info, name, None)
            if cap:
                return int(cap)
    except Exception:
        pass
    try:
        kind = jax.devices()[0].device_kind.lower()
    except Exception:
        kind = ""
    if "7" in kind:
        return 64 * 2**20            # v7x: 64 MiB per TensorCore
    if "v5" in kind or "v6" in kind:
        return 128 * 2**20           # v5e/v5p/v6e: 128 MiB
    return 64 * 2**20                # unknown chip: be conservative


# ---------------------------------------------------------------------------
# Pallas kernel: batched dense apply  out = x @ W
#   grid = (N_pad // tn, K_pad // tk), K axis last (reduction), f32 accumulator
# ---------------------------------------------------------------------------
def _make_apply_kernel(n_sub, sub, x_resident):
    """x_ref: (C or n_sub, B, sub) f32 chunks, w_ref: (tk, tn) bf16,
    o_ref/acc_ref: (B, tn) f32."""

    def kernel(x_ref, w_ref, o_ref, acc_ref):
        k = pl.program_id(1)

        @pl.when(k == 0)
        def _init():
            acc_ref[...] = jnp.zeros_like(acc_ref)

        # When x is fully VMEM-resident, its chunk index includes the K-tile
        # offset; otherwise the pipeline already delivered the k-th group.
        chunk0 = k * n_sub if x_resident else 0

        # Widen the bf16 weight tile in sub-chunks so the f32 temporary stays
        # bounded at (sub, tn) instead of a full (tk, tn) tile.  The 0/1
        # weights are exact in bf16, so results stay f32-exact.
        for s in range(n_sub):
            w_sub = w_ref[s * sub:(s + 1) * sub, :].astype(jnp.float32)
            x_sub = x_ref[chunk0 + s]            # (B, sub) f32
            acc_ref[...] += jnp.dot(
                x_sub, w_sub, preferred_element_type=jnp.float32)

        @pl.when(k == pl.num_programs(1) - 1)
        def _done():
            o_ref[...] = acc_ref[...]

    return kernel


def pallas_linear_apply(x_chunks, w_blocked, *, sub, x_resident, vmem_limit):
    """out = x @ W via a Pallas TPU kernel.

    x_chunks : (C, B_pad, sub) float32, C = K_pad // sub, B_pad % 8 == 0.
    w_blocked: (Kt, Nt, tk, tn) bfloat16, block-tiled weight matrix.
    Returns (B_pad, Nt * tn) float32.
    """
    C, B_pad, sub_ = x_chunks.shape
    Kt, Nt, tk, tn = w_blocked.shape
    assert sub_ == sub and tk % sub == 0 and C * sub == Kt * tk
    assert B_pad % 8 == 0 and tn % 128 == 0 and sub % 128 == 0

    n_sub = tk // sub
    K_pad = Kt * tk
    N_pad = Nt * tn
    grid = (Nt, Kt)

    if x_resident:
        # Whole input resident in VMEM; index_map is constant so it is DMA'd
        # only once (not re-fetched per grid step).
        x_spec = pl.BlockSpec((C, B_pad, sub), lambda j, k: (0, 0, 0))
        x_stream_bytes = x_chunks.size * 4
    else:
        x_spec = pl.BlockSpec((n_sub, B_pad, sub), lambda j, k: (k, 0, 0))
        x_stream_bytes = x_chunks.size * 4 * Nt

    # Block-tiled W: leading (Kt, Nt) dims are squeezed; each tile DMA is one
    # contiguous (tk * tn * 2)-byte read.
    w_spec = pl.BlockSpec((None, None, tk, tn), lambda j, k: (k, j, 0, 0))
    out_spec = pl.BlockSpec((B_pad, tn), lambda j, k: (0, j))

    flops = 2 * B_pad * K_pad * N_pad
    bytes_accessed = x_stream_bytes + w_blocked.size * 2 + B_pad * N_pad * 4

    return pl.pallas_call(
        _make_apply_kernel(n_sub, sub, x_resident),
        out_shape=jax.ShapeDtypeStruct((B_pad, N_pad), jnp.float32),
        grid_spec=pltpu.PrefetchScalarGridSpec(
            num_scalar_prefetch=0,
            grid=grid,
            in_specs=[x_spec, w_spec],
            out_specs=out_spec,
            scratch_shapes=[pltpu.VMEM((B_pad, tn), jnp.float32)],
        ),
        compiler_params=pltpu.CompilerParams(
            dimension_semantics=("parallel", "arbitrary"),
            vmem_limit_bytes=int(vmem_limit),
        ),
        cost_estimate=pl.CostEstimate(
            flops=flops, transcendentals=0, bytes_accessed=bytes_accessed),
    )(x_chunks, w_blocked)


# ---------------------------------------------------------------------------
# Deterministic synthetic system matrix (parallel-beam, nearest detector bin)
# ---------------------------------------------------------------------------
def build_system_matrix(vol_shape, proj_shape):
    """Returns A with shape (R, D), R = prod(proj_shape), D = prod(vol_shape).

    Parallel-beam geometry: detector row r sums voxels with z == r; for each
    angle, a voxel (y, x) contributes to the nearest detector column."""
    Z, Y, X = vol_shape
    det_rows, n_angles, det_cols = proj_shape
    assert det_rows == Z, "synthetic geometry assumes det_rows == Z"

    angles = jnp.arange(n_angles, dtype=jnp.float32) * (jnp.pi / n_angles)
    cy, cx = (Y - 1) / 2.0, (X - 1) / 2.0
    cu = (det_cols - 1) / 2.0
    ys = jnp.arange(Y, dtype=jnp.float32) - cy
    xs = jnp.arange(X, dtype=jnp.float32) - cx

    cos = jnp.cos(angles)[:, None, None]
    sin = jnp.sin(angles)[:, None, None]
    u = jnp.round(xs[None, None, :] * cos + ys[None, :, None] * sin + cu)
    valid = (u >= 0) & (u <= det_cols - 1)
    u = jnp.clip(u, 0, det_cols - 1).astype(jnp.int32)

    # (angles, Y, X, det_cols) one-hot detector-column weights
    col_oh = jax.nn.one_hot(u, det_cols, dtype=jnp.float32) * valid[..., None]
    # detector row <-> z slice
    row_oh = jnp.eye(det_rows, Z, dtype=jnp.float32)

    # A[r, a, c, z, y, x] = row_oh[r, z] * col_oh[a, y, x, c]
    A = jnp.einsum("rz,ayxc->raczyx", row_oh, col_oh)
    return A.reshape(det_rows * n_angles * det_cols, Z * Y * X)


# ---------------------------------------------------------------------------
# Module equivalent
# ---------------------------------------------------------------------------
class PallasLinkedRayTrafoModule:
    """JAX/Pallas equivalent of TorchLinkedRayTrafoModule.forward.

    adjoint=False:  input (..., Z, Y, X)                    -> (..., det_rows, angles, det_cols)
    adjoint=True :  input (..., det_rows, angles, det_cols) -> (..., Z, Y, X)
    """

    def __init__(self, vol_shape, proj_shape, adjoint=False, *, tn=None, tk=None):
        self.vol_shape = tuple(vol_shape)
        self.proj_shape = tuple(proj_shape)
        self.adjoint = adjoint

        # Per-generation VMEM budget and tile defaults:
        #   v5e/v6e (128 MiB VMEM): limit 96 MiB, 2048 tiles
        #   v7x     ( 64 MiB VMEM): limit 48 MiB, 1024 tiles
        vmem_cap = _vmem_capacity_bytes()
        self.vmem_limit = min(vmem_cap * 3 // 4, 100 * 2**20)
        default_tile = 2048 if vmem_cap >= 96 * 2**20 else 1024
        tn = default_tile if tn is None else tn
        tk = default_tile if tk is None else tk

        A = build_system_matrix(self.vol_shape, self.proj_shape)  # (R, D) f32

        if adjoint:
            self.domain_shape = self.proj_shape
            self.range_shape = self.vol_shape
            W = A                    # (R, D): y_flat @ A   -> (B, D)
        else:
            self.domain_shape = self.vol_shape
            self.range_shape = self.proj_shape
            W = A.T                  # (D, R): x_flat @ A.T -> (B, R)

        K, N = W.shape               # contraction dim, output dim
        self.K, self.N = K, N

        # --- tile selection -------------------------------------------------
        K128 = _round_up(K, 128)
        N128 = _round_up(N, 128)
        self.tk = min(tk, K128)
        self.tn = min(tn, N128)
        # Guarantee >= 2 output tiles so the "parallel" N grid axis spans both
        # TensorCores on v7x (cheap everywhere else).
        if N128 > 128 and _round_up(N128, self.tn) // self.tn < 2:
            self.tn = _round_up(-(-N128 // 2), 128)
        self.K_pad = _round_up(K, self.tk)
        self.N_pad = _round_up(N, self.tn)
        # Sub-chunk of the weight tile's K dim for on-chip bf16->f32 widening
        # (bounds the f32 temporary to sub x tn).
        self.sub = 256 if self.tk % 256 == 0 else 128

        Kt = self.K_pad // self.tk
        Nt = self.N_pad // self.tn

        # Weight entries are exactly 0/1 -> bf16 storage is lossless and
        # halves the dominant HBM stream.  Pre-pack into a block-tiled
        # (Kt, Nt, tk, tn) layout so each weight-tile DMA is contiguous.
        W_pad = jnp.zeros((self.K_pad, self.N_pad), jnp.bfloat16)
        W_pad = W_pad.at[:K, :N].set(W.astype(jnp.bfloat16))
        self.W = W_pad.reshape(Kt, self.tk, Nt, self.tn).transpose(0, 2, 1, 3)

    def __call__(self, inp):
        orig_batch_dims = inp.shape[:-3]
        assert inp.shape[-3:] == self.domain_shape
        # Mirror custom_fwd(cast_inputs=torch.float32)
        x = inp.astype(jnp.float32).reshape(-1, self.K)
        B = x.shape[0]
        B_pad = _round_up(max(B, 1), 8)        # full-sublane output stores

        x_pad = jnp.zeros((B_pad, self.K_pad), jnp.float32).at[:B, : self.K].set(x)
        # Chunked (C, B_pad, sub) layout: the kernel indexes chunks along the
        # leading axis only (no dynamic lane-dim slicing needed).
        C = self.K_pad // self.sub
        x_chunks = x_pad.reshape(B_pad, C, self.sub).transpose(1, 0, 2)

        # Keep the whole input resident in VMEM when small (DMA'd once
        # instead of once per output tile).  Factor 2 accounts for the
        # pipeline's double buffer.
        x_resident = 2 * x_chunks.size * 4 <= min(8 * 2**20, self.vmem_limit // 8)

        out_pad = pallas_linear_apply(
            x_chunks, self.W, sub=self.sub,
            x_resident=x_resident, vmem_limit=self.vmem_limit)
        out = out_pad[:B, : self.N]
        return out.reshape(*orig_batch_dims, *self.range_shape)


# ---------------------------------------------------------------------------
# Demo / correctness check
# ---------------------------------------------------------------------------
if __name__ == "__main__":
    # Small geometry: volume Z=Y=X=8, projections det_rows=8, angles=6, det_cols=8
    vol_shape = (8, 8, 8)        # D = 512
    proj_shape = (8, 6, 8)       # R = 384
    batch = 2

    key = jax.random.PRNGKey(0)
    x = jax.random.normal(key, (batch, *vol_shape), dtype=jnp.float32)

    # Forward projection
    fp = PallasLinkedRayTrafoModule(vol_shape, proj_shape, adjoint=False)
    y = fp(x)
    y = jax.block_until_ready(y)

    # Back projection (adjoint)
    bp = PallasLinkedRayTrafoModule(vol_shape, proj_shape, adjoint=True)
    xb = bp(y)
    xb = jax.block_until_ready(xb)

    # Reference in plain JAX (float32)
    A = build_system_matrix(vol_shape, proj_shape)
    D = math.prod(vol_shape)
    R = math.prod(proj_shape)
    x_flat = x.reshape(batch, D)
    y_ref = (x_flat @ A.T).reshape(batch, *proj_shape)
    xb_ref = (y.reshape(batch, R) @ A).reshape(batch, *vol_shape)

    assert y.shape == (batch, *proj_shape)
    assert xb.shape == (batch, *vol_shape)
    assert jnp.allclose(y, y_ref, atol=1e-4, rtol=1e-4)
    assert jnp.allclose(xb, xb_ref, atol=1e-4, rtol=1e-4)

    print("KERNEL_OK")
</pallas_src>

<mosaic_0001>
module attributes {stable_mosaic.version = 11 : i64} {
  func.func @kernel(%arg0: i32, %arg1: i32, %arg2: memref<2x8x256xf32, #tpu.memory_space<vmem>>, %arg3: memref<1x1x512x256xbf16, #tpu.memory_space<vmem>>, %arg4: memref<8x256xf32, #tpu.memory_space<vmem>>, %arg5: memref<8x256xf32, #tpu.memory_space<vmem>>) attributes {dimension_semantics = [#tpu.dimension_semantics<parallel>, #tpu.dimension_semantics<arbitrary>], iteration_bounds = array<i64: 2, 1>, scalar_prefetch = 0 : i64, scratch_operands = 1 : i64, tpu.core_type = #tpu.core_type<tc>, window_params = [{pipeline_mode = #tpu.pipeline_mode<synchronous>, transform_indices = @transform_0, window_bounds = array<i64: 2, 8, 256>}, {transform_indices = @transform_1, window_bounds = array<i64: 1, 1, 512, 256>}, {transform_indices = @transform_2, window_bounds = array<i64: 8, 256>}]} {
    %c0_i32 = arith.constant 0 : i32
    %0 = arith.cmpi eq, %arg1, %c0_i32 : i32
    %1 = arith.extui %0 : i1 to i32
    %c0_i32_0 = arith.constant 0 : i32
    %2 = arith.cmpi ne, %1, %c0_i32_0 : i32
    scf.if %2 {
      %cst_23 = arith.constant 0.000000e+00 : f32
      %29 = vector.broadcast %cst_23 : f32 to vector<8x256xf32>
      %c0_24 = arith.constant 0 : index
      %c0_25 = arith.constant 0 : index
      %30 = vector.load %arg5[%c0_24, %c0_25] : memref<8x256xf32, #tpu.memory_space<vmem>>, vector<8x256xf32>
      tpu.vector_store %arg5[%c0_24, %c0_25], %29 {strides = array<i32>} : memref<8x256xf32, #tpu.memory_space<vmem>>, vector<8x256xf32>,
    } else {
    }
    %c2_i32 = arith.constant 2 : i32
    %3 = arith.muli %arg1, %c2_i32 : i32
    %c0 = arith.constant 0 : index
    %c0_1 = arith.constant 0 : index
    %c0_2 = arith.constant 0 : index
    %c0_3 = arith.constant 0 : index
    %4 = vector.load %arg3[%c0, %c0_1, %c0_2, %c0_3] : memref<1x1x512x256xbf16, #tpu.memory_space<vmem>>, vector<1x1x256x256xbf16>
    %5 = vector.shape_cast %4 : vector<1x1x256x256xbf16> to vector<256x256xbf16>
    %6 = arith.extf %5 : vector<256x256xbf16> to vector<256x256xf32>
    %c0_i32_4 = arith.constant 0 : i32
    %7 = arith.addi %3, %c0_i32_4 : i32
    %8 = arith.index_cast %7 : i32 to index
    %c0_5 = arith.constant 0 : index
    %c0_6 = arith.constant 0 : index
    %9 = vector.load %arg2[%8, %c0_5, %c0_6] : memref<2x8x256xf32, #tpu.memory_space<vmem>>, vector<1x8x256xf32>
    %10 = vector.shape_cast %9 : vector<1x8x256xf32> to vector<8x256xf32>
    %c0_7 = arith.constant 0 : index
    %c0_8 = arith.constant 0 : index
    %11 = vector.load %arg5[%c0_7, %c0_8] : memref<8x256xf32, #tpu.memory_space<vmem>>, vector<8x256xf32>
    %cst = arith.constant dense<0.000000e+00> : vector<8x256xf32>
    %12 = tpu.matmul %10, %6, %cst {dimension_numbers = #tpu.dot_dimension_numbers<[1], [0], [0], [1], [0, 0, 1, 1], [], []>} : vector<8x256xf32>, vector<256x256xf32>, vector<8x256xf32> -> vector<8x256xf32>
    %13 = arith.addf %11, %12 : vector<8x256xf32>
    %c0_9 = arith.constant 0 : index
    %c0_10 = arith.constant 0 : index
    %14 = vector.load %arg5[%c0_9, %c0_10] : memref<8x256xf32, #tpu.memory_space<vmem>>, vector<8x256xf32>
    tpu.vector_store %arg5[%c0_9, %c0_10], %13 {strides = array<i32>} : memref<8x256xf32, #tpu.memory_space<vmem>>, vector<8x256xf32>,
    %c0_11 = arith.constant 0 : index
    %c0_12 = arith.constant 0 : index
    %c256 = arith.constant 256 : index
    %c0_13 = arith.constant 0 : index
    %15 = vector.load %arg3[%c0_11, %c0_12, %c256, %c0_13] : memref<1x1x512x256xbf16, #tpu.memory_space<vmem>>, vector<1x1x256x256xbf16>
    %16 = vector.shape_cast %15 : vector<1x1x256x256xbf16> to vector<256x256xbf16>
    %17 = arith.extf %16 : vector<256x256xbf16> to vector<256x256xf32>
    %c1_i32 = arith.constant 1 : i32
    %18 = arith.addi %3, %c1_i32 : i32
    %19 = arith.index_cast %18 : i32 to index
    %c0_14 = arith.constant 0 : index
    %c0_15 = arith.constant 0 : index
    %20 = vector.load %arg2[%19, %c0_14, %c0_15] : memref<2x8x256xf32, #tpu.memory_space<vmem>>, vector<1x8x256xf32>
    %21 = vector.shape_cast %20 : vector<1x8x256xf32> to vector<8x256xf32>
    %c0_16 = arith.constant 0 : index
    %c0_17 = arith.constant 0 : index
    %22 = vector.load %arg5[%c0_16, %c0_17] : memref<8x256xf32, #tpu.memory_space<vmem>>, vector<8x256xf32>
    %cst_18 = arith.constant dense<0.000000e+00> : vector<8x256xf32>
    %23 = tpu.matmul %21, %17, %cst_18 {dimension_numbers = #tpu.dot_dimension_numbers<[1], [0], [0], [1], [0, 0, 1, 1], [], []>} : vector<8x256xf32>, vector<256x256xf32>, vector<8x256xf32> -> vector<8x256xf32>
    %24 = arith.addf %22, %23 : vector<8x256xf32>
    %c0_19 = arith.constant 0 : index
    %c0_20 = arith.constant 0 : index
    %25 = vector.load %arg5[%c0_19, %c0_20] : memref<8x256xf32, #tpu.memory_space<vmem>>, vector<8x256xf32>
    tpu.vector_store %arg5[%c0_19, %c0_20], %24 {strides = array<i32>} : memref<8x256xf32, #tpu.memory_space<vmem>>, vector<8x256xf32>,
    %c0_i32_21 = arith.constant 0 : i32
    %26 = arith.cmpi eq, %arg1, %c0_i32_21 : i32
    %27 = arith.extui %26 : i1 to i32
    %c0_i32_22 = arith.constant 0 : i32
    %28 = arith.cmpi ne, %27, %c0_i32_22 : i32
    scf.if %28 {
      %c0_23 = arith.constant 0 : index
      %c0_24 = arith.constant 0 : index
      %29 = vector.load %arg5[%c0_23, %c0_24] : memref<8x256xf32, #tpu.memory_space<vmem>>, vector<8x256xf32>
      %c0_25 = arith.constant 0 : index
      %c0_26 = arith.constant 0 : index
      %30 = vector.load %arg4[%c0_25, %c0_26] : memref<8x256xf32, #tpu.memory_space<vmem>>, vector<8x256xf32>
      tpu.vector_store %arg4[%c0_25, %c0_26], %29 {strides = array<i32>} : memref<8x256xf32, #tpu.memory_space<vmem>>, vector<8x256xf32>,
    } else {
    }
    return
  }
  func.func @transform_0(%arg0: i32, %arg1: i32) -> (i32, i32, i32) {
    %c0_i32 = arith.constant 0 : i32
    %c0_i32_0 = arith.constant 0 : i32
    %c0_i32_1 = arith.constant 0 : i32
    %c0_i32_2 = arith.constant 0 : i32
    return %c0_i32, %c0_i32_0, %c0_i32_1 : i32, i32, i32
  }
  func.func @transform_1(%arg0: i32, %arg1: i32) -> (i32, i32, i32, i32) {
    %c0_i32 = arith.constant 0 : i32
    %c0_i32_0 = arith.constant 0 : i32
    %c0_i32_1 = arith.constant 0 : i32
    return %arg1, %arg0, %c0_i32, %c0_i32_0 : i32, i32, i32, i32
  }
  func.func @transform_2(%arg0: i32, %arg1: i32) -> (i32, i32) {
    %c0_i32 = arith.constant 0 : i32
    %c0_i32_0 = arith.constant 0 : i32
    return %c0_i32, %arg0 : i32, i32
  }
}

</mosaic_0001>

<llo_original>
// kernel: tpu_custom_call.1
$region0: #{tpu_custom_call.1}
  #allocation0 [shape = 'u32[]', space=smem, size = 0x4, offset = 0x4, fixed_abs, tag = 'smem constant byte address 0x4 - core index']
  #allocation1 [shape = 'u32[72,128]{1,0:T(1,128)}', space=vmem, size = 0x9000, scoped, tag = 'internal scratch']
  #allocation2 [shape = 'f32[8,256]{1,0:T(8,128)}', space=vmem, size = 0x2000, scoped, tag = 'scratch operand']
  %s0 = inlined_call_operand.hbm [shape: f32[2,8,256], index: 0, kind: input, shape index: {}]
  %s1 = inlined_call_operand.hbm [shape: bf16[1,2,512,256], index: 1, kind: input, shape index: {}]
  %s2 = inlined_call_operand.hbm [shape: f32[8,512], index: 2, kind: output, shape index: {}]
  %s3 = sld [smem:[#allocation0]]
  $region57: #{tpu_custom_call.1} parent=0
    _
  %s5 = ssub.s32 1, %s3
  %s6 = scalar_select 0, %s5, %s3
  $region1: #{tpu_custom_call.1} parent=0
    #allocation3 [shape = 'u8[16384]{0}', space=vmem, size = 0x4000, scoped, tag = 'input window, operand 0, single buffered']
    #allocation4 [shape = 's32[2]{0}', space=sflag, size = 0x8, scoped, tag = 'scoped memory for tpu_custom_call.1']
    #allocation5 [shape = 's32[2]{0}', space=sflag, size = 0x8, scoped, tag = 'scoped memory for tpu_custom_call.1']
    #allocation6 [shape = 'u8[524288]{0}', space=vmem, size = 0x80000, scoped, tag = 'input window, operand 1']
    #allocation7 [shape = 's32[2]{0}', space=sflag, size = 0x8, scoped, tag = 'scoped memory for tpu_custom_call.1']
    #allocation8 [shape = 'u8[16384]{0}', space=vmem, size = 0x4000, scoped, tag = 'output window, operand 0']
    %7 = vsyncpa [#allocation4], 0
    %8 = vsyncpa [#allocation7], 0
    %s9 = scalar_lea.sflag [#allocation7], 1
    %10 = vsyncpa %s9, 0
    %11 = vsyncpa [#allocation5], 0
    %s12 = scalar_lea.sflag [#allocation5], 1
    %13 = vsyncpa %s12, 0
    loop: start=0, step=1, limit=4
    $region2: #{tpu_custom_call.1} parent=1 // loop_pre_header
      _
    $region3: #{tpu_custom_call.1} parent=1 // loop_header
      %s15 = sphi 0, %s19
      %p16 = scmp.ge.s32.totalorder %s15, 4
      %s22 = sphi 0, %s34
      %s23 = sphi 0, %s30
      %s24 = sphi 0, %s22
      %s25 = sphi 0, %s23
      %s26 = sphi 0, %s24
      %s27 = sphi 0, %s25
      %s35 = sphi 0, %s35
      %s37 = sphi 0, %s35
      %s38 = sphi 0, %s37
      %s52 = sphi 0, %s38
      %s60 = sphi 0, %s62
      %s63 = sphi 0, %s60
      %s64 = sphi 0, %s63
      %s80 = sphi 0, %s64
      %s86 = sphi 0, %s88
      %s89 = sphi 0, %s86
      %s90 = sphi 0, %s89
      %s106 = sphi 0, %s90
    $region4: #{tpu_custom_call.1} parent=1 // loop_header_branch
      %18 = sbr.rel (%p16) target = $region8
    $region5: #{tpu_custom_call.1} parent=1 // loop_body
      %s20 = ssub.s32 %s15, 1
      %s21 = ssub.s32 %s15, 2
      %s28 = sadd.s32 1, %s23
      %p29 = scmp.ge.s32.totalorder %s28, 1
      %s30 = scalar_select %p29, 0, %s28
      %s31 = sadd.s32 1, %s22
      %s32 = scalar_select %p29, %s31, %s22
      %p33 = scmp.ge.s32.totalorder %s32, 2
      %s34 = scalar_select %p33, 0, %s32
      %s36 = sadd.s32 %s35, 1
      %p39 = scmp.eq.s32.totalorder %s15, 1
      %p40 = scmp.ne.s32.totalorder %s35, %s37
      %p41 = scmp.eq.s32.totalorder %s15, 0
      %p42 = por %p40, %p41
      %p43 = scmp.ne.s32.totalorder %s35, %s37
      %p44 = scmp.eq.s32.totalorder %s20, 1
      %p45 = por %p43, %p44
      %p46 = scmp.ne.s32.totalorder %s37, %s38
      %p47 = scmp.eq.s32.totalorder %s20, 0
      %p48 = por %p46, %p47
      %p49 = scmp.ne.s32.totalorder %s37, %s38
      %p50 = scmp.eq.s32.totalorder %s21, 1
      %p51 = por %p49, %p50
      %p53 = scmp.ne.s32.totalorder %s38, %s52
      %p54 = scmp.eq.s32.totalorder %s21, 0
      %p55 = por %p53, %p54
      %s56 = ssub.s32 %s23, %s30
      %s57 = ssub.s32 %s22, %s34
      %s58 = sor.u32 %s56, %s57
      %p59 = scmp.eq.s32.totalorder %s58, 0
      %s61 = sadd.s32 %s60, 1
      %s62 = scalar_select %p59, %s60, %s61
      %p65 = pneg %p59
      %p66 = scmp.eq.s32.totalorder %s15, 1
      %p67 = por %p65, %p66
      %p68 = scmp.ne.s32.totalorder %s60, %s63
      %p69 = scmp.eq.s32.totalorder %s15, 0
      %p70 = por %p68, %p69
      %p71 = scmp.ne.s32.totalorder %s60, %s63
      %p72 = scmp.eq.s32.totalorder %s20, 1
      %p73 = por %p71, %p72
      %p74 = scmp.ne.s32.totalorder %s63, %s64
      %p75 = scmp.eq.s32.totalorder %s20, 0
      %p76 = por %p74, %p75
      %p77 = scmp.ne.s32.totalorder %s63, %s64
      %p78 = scmp.eq.s32.totalorder %s21, 1
      %p79 = por %p77, %p78
      %p81 = scmp.ne.s32.totalorder %s64, %s80
      %p82 = scmp.eq.s32.totalorder %s21, 0
      %p83 = por %p81, %p82
      %s84 = ssub.s32 %s22, %s34
      %p85 = scmp.eq.s32.totalorder %s84, 0
      %s87 = sadd.s32 %s86, 1
      %s88 = scalar_select %p85, %s86, %s87
      %p91 = pneg %p85
      %p92 = scmp.eq.s32.totalorder %s15, 1
      %p93 = por %p91, %p92
      %p94 = scmp.ne.s32.totalorder %s86, %s89
      %p95 = scmp.eq.s32.totalorder %s15, 0
      %p96 = por %p94, %p95
      %p97 = scmp.ne.s32.totalorder %s86, %s89
      %p98 = scmp.eq.s32.totalorder %s20, 1
      %p99 = por %p97, %p98
      %p100 = scmp.ne.s32.totalorder %s89, %s90
      %p101 = scmp.eq.s32.totalorder %s20, 0
      %p102 = por %p100, %p101
      %p103 = scmp.ne.s32.totalorder %s89, %s90
      %p104 = scmp.eq.s32.totalorder %s21, 1
      %p105 = por %p103, %p104
      %p107 = scmp.ne.s32.totalorder %s90, %s106
      %p108 = scmp.eq.s32.totalorder %s21, 0
      %p109 = por %p107, %p108
      %p110 = scmp.le.s32.totalorder 1, %s15
      %p111 = scmp.lt.s32.totalorder %s15, 3
      %p112 = pnand %p110, %p111
      %p113 = pneg %p112
      // Predicated region
      $region9: #{tpu_custom_call.1} parent=5 // pred_check
        _
      $region10: #{tpu_custom_call.1} parent=5 // pred_check_branch
        %115 = sbr.rel (%p112) target = $region12
      $region11: #{tpu_custom_call.1} parent=5 // pred_region
        %s116 = ssub.s32 %s15, 1
        // Predicated region
        $region13: #{tpu_custom_call.1} parent=11 // pred_check
          %p117 = pneg %p48
        $region14: #{tpu_custom_call.1} parent=11 // pred_check_branch
          %119 = sbr.rel (%p117) target = $region16
        $region15: #{tpu_custom_call.1} parent=11 // pred_region
          %121 = vsyncadd [#allocation4], 0
          %s122 = sshll.u32 %s0, 4
          %s123 = int_to_ptr.hbm [resolvable:$true] %s122
          %s124 = sshll.u32 [#allocation3], 4
          %s125 = int_to_ptr.vmem [resolvable:$true] %s124
          %130 = dma.hbm_to_vmem [thread:$0]  %s123, 512, %s125, [#allocation4], 256, 256, 16
        $region16: #{tpu_custom_call.1} parent=11 // pred_fallthru
          _
      $region12: #{tpu_custom_call.1} parent=5 // pred_fallthru
        _
      %p131 = scmp.lt.s32.totalorder %s15, 2
      // Predicated region
      $region17: #{tpu_custom_call.1} parent=5 // pred_check
        %p132 = pneg %p131
      $region18: #{tpu_custom_call.1} parent=5 // pred_check_branch
        %134 = sbr.rel (%p132) target = $region20
      $region19: #{tpu_custom_call.1} parent=5 // pred_region
        // Predicated region
        $region21: #{tpu_custom_call.1} parent=19 // pred_check
          %p135 = pneg %p70
        $region22: #{tpu_custom_call.1} parent=19 // pred_check_branch
          %137 = sbr.rel (%p135) target = $region24
        $region23: #{tpu_custom_call.1} parent=19 // pred_region
          %s138 = sand.u32 %s60, 1
          %s139 = scalar_lea.sflag [#allocation7], %s138
          %s140 = sand.u32 %s60, 1
          %s141 = smul.addr %s140, 512
          %s142 = scalar_lea.vmem [#allocation6], %s141
          %144 = vsyncadd %s139, 0
          %s145 = smul.addr %s22, 128
          %s146 = smul.addr %s23, 256
          %s147 = sadd.s32 %s145, %s146
          %s148 = smul.addr %s147, 4
          %s149 = scalar_lea.hbm %s1, %s148
          %s150 = sshll.u32 %s149, 4
          %s151 = int_to_ptr.hbm [resolvable:$true] %s150
          %s152 = sshll.u32 %s142, 4
          %s153 = int_to_ptr.vmem [resolvable:$true] %s152
          %158 = dma.hbm_to_vmem [thread:$0]  %s151, 8192, %s153, %s139, 128, 128, 8
        $region24: #{tpu_custom_call.1} parent=19 // pred_fallthru
          _
      $region20: #{tpu_custom_call.1} parent=5 // pred_fallthru
        _
      %p159 = scmp.le.s32.totalorder 1, %s15
      %p160 = scmp.lt.s32.totalorder %s15, 3
      %p161 = pnand %p159, %p160
      %p162 = pneg %p161
      // Predicated region
      $region25: #{tpu_custom_call.1} parent=5 // pred_check
        _
      $region26: #{tpu_custom_call.1} parent=5 // pred_check_branch
        %164 = sbr.rel (%p161) target = $region28
      $region27: #{tpu_custom_call.1} parent=5 // pred_region
        %s165 = ssub.s32 %s15, 1
        // Predicated region
        $region29: #{tpu_custom_call.1} parent=27 // pred_check
          %p166 = pneg %p48
        $region30: #{tpu_custom_call.1} parent=27 // pred_check_branch
          %168 = sbr.rel (%p166) target = $region32
        $region31: #{tpu_custom_call.1} parent=27 // pred_region
          %170 = dma.done [#allocation4], 512
        $region32: #{tpu_custom_call.1} parent=27 // pred_fallthru
          _
        %s171 = sand.u32 %s63, 1
        %s172 = scalar_lea.sflag [#allocation7], %s171
        %s173 = sand.u32 %s63, 1
        %s174 = smul.addr %s173, 512
        %s175 = scalar_lea.vmem [#allocation6], %s174
        // Predicated region
        $region33: #{tpu_custom_call.1} parent=27 // pred_check
          %p176 = pneg %p76
        $region34: #{tpu_custom_call.1} parent=27 // pred_check_branch
          %178 = sbr.rel (%p176) target = $region36
        $region35: #{tpu_custom_call.1} parent=27 // pred_region
          %180 = dma.done %s172, 8192
        $region36: #{tpu_custom_call.1} parent=27 // pred_fallthru
          _
        %p181 = pneg %p48
        %p182 = pneg %p45
        %s183 = sand.u32 %s63, 1
        %s184 = scalar_lea.sflag [#allocation7], %s183
        %s185 = sand.u32 %s63, 1
        %s186 = smul.addr %s185, 512
        %s187 = scalar_lea.vmem [#allocation6], %s186
        %p188 = pneg %p76
        %p189 = pneg %p73
        %p190 = pneg %p102
        %p191 = pneg %p99
        %s192 = sand.u32 %s89, 1
        %s193 = scalar_lea.sflag [#allocation5], %s192
        %s194 = sand.u32 %s89, 1
        %s195 = smul.addr %s194, 16
        %s196 = scalar_lea.vmem [#allocation8], %s195
        %s197 = smul.u32 2, %s24
        %p198 = scmp.eq.s32.totalorder %s25, 0
        // Predicated region
        $region37: #{tpu_custom_call.1} parent=27 // pred_check
          %p199 = pneg %p198
        $region38: #{tpu_custom_call.1} parent=27 // pred_check_branch
          %201 = sbr.rel (%p199) target = $region40
        $region39: #{tpu_custom_call.1} parent=27 // pred_region
          %202 = vst [vmem:[#allocation2] sm:$0xff] 0.0
          %203 = vst [vmem:[#allocation2 + $0x8] sm:$0xff] 0.0
        $region40: #{tpu_custom_call.1} parent=27 // pred_fallthru
          _
        %s204 = smul.u32 %s25, 2
        %v205 = vld [vmem:[%s175] sm:$0xff]
        %v206 = vld [vmem:[%s175 + $0x8] sm:$0xff]
        %v207 = vld [vmem:[%s175 + $0x10] sm:$0xff]
        %v208 = vld [vmem:[%s175 + $0x18] sm:$0xff]
        %v209 = vld [vmem:[%s175 + $0x20] sm:$0xff]
        %v210 = vld [vmem:[%s175 + $0x28] sm:$0xff]
        %v211 = vld [vmem:[%s175 + $0x30] sm:$0xff]
        %v212 = vld [vmem:[%s175 + $0x38] sm:$0xff]
        %v213 = vld [vmem:[%s175 + $0x40] sm:$0xff]
        %v214 = vld [vmem:[%s175 + $0x48] sm:$0xff]
        %v215 = vld [vmem:[%s175 + $0x50] sm:$0xff]
        %v216 = vld [vmem:[%s175 + $0x58] sm:$0xff]
        %v217 = vld [vmem:[%s175 + $0x60] sm:$0xff]
        %v218 = vld [vmem:[%s175 + $0x68] sm:$0xff]
        %v219 = vld [vmem:[%s175 + $0x70] sm:$0xff]
        %v220 = vld [vmem:[%s175 + $0x78] sm:$0xff]
        %v221 = vld [vmem:[%s175 + $0x80] sm:$0xff]
        %v222 = vld [vmem:[%s175 + $0x88] sm:$0xff]
        %v223 = vld [vmem:[%s175 + $0x90] sm:$0xff]
        %v224 = vld [vmem:[%s175 + $0x98] sm:$0xff]
        %v225 = vld [vmem:[%s175 + $0xa0] sm:$0xff]
        %v226 = vld [vmem:[%s175 + $0xa8] sm:$0xff]
        %v227 = vld [vmem:[%s175 + $0xb0] sm:$0xff]
        %v228 = vld [vmem:[%s175 + $0xb8] sm:$0xff]
        %v229 = vld [vmem:[%s175 + $0xc0] sm:$0xff]
        %v230 = vld [vmem:[%s175 + $0xc8] sm:$0xff]
        %v231 = vld [vmem:[%s175 + $0xd0] sm:$0xff]
        %v232 = vld [vmem:[%s175 + $0xd8] sm:$0xff]
        %v233 = vld [vmem:[%s175 + $0xe0] sm:$0xff]
        %v234 = vld [vmem:[%s175 + $0xe8] sm:$0xff]
        %v235 = vld [vmem:[%s175 + $0xf0] sm:$0xff]
        %v236 = vld [vmem:[%s175 + $0xf8] sm:$0xff]
        %v237 = vunpack.c.l.bf16 %v205
        %v238 = vunpack.c.h.bf16 %v205
        %v239 = vunpack.c.l.bf16 %v206
        %v240 = vunpack.c.h.bf16 %v206
        %v241 = vunpack.c.l.bf16 %v207
        %v242 = vunpack.c.h.bf16 %v207
        %v243 = vunpack.c.l.bf16 %v208
        %v244 = vunpack.c.h.bf16 %v208
        %v245 = vunpack.c.l.bf16 %v209
        %v246 = vunpack.c.h.bf16 %v209
        %v247 = vunpack.c.l.bf16 %v210
        %v248 = vunpack.c.h.bf16 %v210
        %v249 = vunpack.c.l.bf16 %v211
        %v250 = vunpack.c.h.bf16 %v211
        %v251 = vunpack.c.l.bf16 %v212
        %v252 = vunpack.c.h.bf16 %v212
        %v253 = vunpack.c.l.bf16 %v213
        %v254 = vunpack.c.h.bf16 %v213
        %v255 = vunpack.c.l.bf16 %v214
        %v256 = vunpack.c.h.bf16 %v214
        %v257 = vunpack.c.l.bf16 %v215
        %v258 = vunpack.c.h.bf16 %v215
        %v259 = vunpack.c.l.bf16 %v216
        %v260 = vunpack.c.h.bf16 %v216
        %v261 = vunpack.c.l.bf16 %v217
        %v262 = vunpack.c.h.bf16 %v217
        %v263 = vunpack.c.l.bf16 %v218
        %v264 = vunpack.c.h.bf16 %v218
        %v265 = vunpack.c.l.bf16 %v219
        %v266 = vunpack.c.h.bf16 %v219
        %v267 = vunpack.c.l.bf16 %v220
        %v268 = vunpack.c.h.bf16 %v220
        %v269 = vunpack.c.l.bf16 %v221
        %v270 = vunpack.c.h.bf16 %v221
        %v271 = vunpack.c.l.bf16 %v222
        %v272 = vunpack.c.h.bf16 %v222
        %v273 = vunpack.c.l.bf16 %v223
        %v274 = vunpack.c.h.bf16 %v223
        %v275 = vunpack.c.l.bf16 %v224
        %v276 = vunpack.c.h.bf16 %v224
        %v277 = vunpack.c.l.bf16 %v225
        %v278 = vunpack.c.h.bf16 %v225
        %v279 = vunpack.c.l.bf16 %v226
        %v280 = vunpack.c.h.bf16 %v226
        %v281 = vunpack.c.l.bf16 %v227
        %v282 = vunpack.c.h.bf16 %v227
        %v283 = vunpack.c.l.bf16 %v228
        %v284 = vunpack.c.h.bf16 %v228
        %v285 = vunpack.c.l.bf16 %v229
        %v286 = vunpack.c.h.bf16 %v229
        %v287 = vunpack.c.l.bf16 %v230
        %v288 = vunpack.c.h.bf16 %v230
        %v289 = vunpack.c.l.bf16 %v231
        %v290 = vunpack.c.h.bf16 %v231
        %v291 = vunpack.c.l.bf16 %v232
        %v292 = vunpack.c.h.bf16 %v232
        %v293 = vunpack.c.l.bf16 %v233
        %v294 = vunpack.c.h.bf16 %v233
        %v295 = vunpack.c.l.bf16 %v234
        %v296 = vunpack.c.h.bf16 %v234
        %v297 = vunpack.c.l.bf16 %v235
        %v298 = vunpack.c.h.bf16 %v235
        %v299 = vunpack.c.l.bf16 %v236
        %v300 = vunpack.c.h.bf16 %v236
        %s301 = smul.u32 %s204, 2
        %s302 = smul.addr %s301, 8
        %s303 = scalar_lea.vmem [#allocation3], %s302
        %v304 = vld [vmem:[%s303] sm:$0xff]
        %v305 = vld [vmem:[%s303 + $0x8] sm:$0xff]
        %v306 = vld [vmem:[#allocation2] sm:$0xff]
        %v307 = vld [vmem:[#allocation2 + $0x8] sm:$0xff]
        %308 = vmatpush.msra.mxu0 %v267
        %309 = vmatpush.msra.mxu0 %v265
        %310 = vmatpush.msra.mxu0 %v263
        %311 = vmatpush.msra.mxu0 %v261
        %312 = vmatpush.msra.mxu0 %v259
        %313 = vmatpush.msra.mxu0 %v257
        %314 = vmatpush.msra.mxu0 %v255
        %315 = vmatpush.msra.mxu0 %v253
        %316 = vmatpush.msra.mxu0 %v251
        %317 = vmatpush.msra.mxu0 %v249
        %318 = vmatpush.msra.mxu0 %v247
        %319 = vmatpush.msra.mxu0 %v245
        %320 = vmatpush.msra.mxu0 %v243
        %321 = vmatpush.msra.mxu0 %v241
        %322 = vmatpush.msra.mxu0 %v239
        %323 = vmatpush.msra.mxu0 %v237
        %324 = vmatmul.f32.gmra.mxu0 %v304
        %v325 = vpop.f32.mrf.mxu0
        %v326 = vadd.f32 0.0, %v325
        %327 = vdwg.mxu0
        %328 = vmatpush.msra.mxu0 %v299
        %329 = vmatpush.msra.mxu0 %v297
        %330 = vmatpush.msra.mxu0 %v295
        %331 = vmatpush.msra.mxu0 %v293
        %332 = vmatpush.msra.mxu0 %v291
        %333 = vmatpush.msra.mxu0 %v289
        %334 = vmatpush.msra.mxu0 %v287
        %335 = vmatpush.msra.mxu0 %v285
        %336 = vmatpush.msra.mxu0 %v283
        %337 = vmatpush.msra.mxu0 %v281
        %338 = vmatpush.msra.mxu0 %v279
        %339 = vmatpush.msra.mxu0 %v277
        %340 = vmatpush.msra.mxu0 %v275
        %341 = vmatpush.msra.mxu0 %v273
        %342 = vmatpush.msra.mxu0 %v271
        %343 = vmatpush.msra.mxu0 %v269
        %344 = vmatmul.f32.gmra.mxu0 %v305
        %v345 = vpop.f32.mrf.mxu0
        %v346 = vadd.f32 %v326, %v345
        %347 = vdwg.mxu0
        %348 = vmatpush.msra.mxu0 %v268
        %349 = vmatpush.msra.mxu0 %v266
        %350 = vmatpush.msra.mxu0 %v264
        %351 = vmatpush.msra.mxu0 %v262
        %352 = vmatpush.msra.mxu0 %v260
        %353 = vmatpush.msra.mxu0 %v258
        %354 = vmatpush.msra.mxu0 %v256
        %355 = vmatpush.msra.mxu0 %v254
        %356 = vmatpush.msra.mxu0 %v252
        %357 = vmatpush.msra.mxu0 %v250
        %358 = vmatpush.msra.mxu0 %v248
        %359 = vmatpush.msra.mxu0 %v246
        %360 = vmatpush.msra.mxu0 %v244
        %361 = vmatpush.msra.mxu0 %v242
        %362 = vmatpush.msra.mxu0 %v240
        %363 = vmatpush.msra.mxu0 %v238
        %364 = vmatmul.f32.gmra.mxu0 %v304
        %v365 = vpop.f32.mrf.mxu0
        %v366 = vadd.f32 0.0, %v365
        %367 = vdwg.mxu0
        %368 = vmatpush.msra.mxu0 %v300
        %369 = vmatpush.msra.mxu0 %v298
        %370 = vmatpush.msra.mxu0 %v296
        %371 = vmatpush.msra.mxu0 %v294
        %372 = vmatpush.msra.mxu0 %v292
        %373 = vmatpush.msra.mxu0 %v290
        %374 = vmatpush.msra.mxu0 %v288
        %375 = vmatpush.msra.mxu0 %v286
        %376 = vmatpush.msra.mxu0 %v284
        %377 = vmatpush.msra.mxu0 %v282
        %378 = vmatpush.msra.mxu0 %v280
        %379 = vmatpush.msra.mxu0 %v278
        %380 = vmatpush.msra.mxu0 %v276
        %381 = vmatpush.msra.mxu0 %v274
        %382 = vmatpush.msra.mxu0 %v272
        %383 = vmatpush.msra.mxu0 %v270
        %384 = vmatmul.f32.gmra.mxu0 %v305
        %v385 = vpop.f32.mrf.mxu0
        %v386 = vadd.f32 %v366, %v385
        %387 = vdwg.mxu0
        %v388 = vadd.f32 %v306, %v346
        %v389 = vadd.f32 %v307, %v386
        %390 = vst [vmem:[#allocation2] sm:$0xff] %v388
        %391 = vst [vmem:[#allocation2 + $0x8] sm:$0xff] %v389
        %v392 = vld [vmem:[%s175 + $0x100] sm:$0xff]
        %v393 = vld [vmem:[%s175 + $0x108] sm:$0xff]
        %v394 = vld [vmem:[%s175 + $0x110] sm:$0xff]
        %v395 = vld [vmem:[%s175 + $0x118] sm:$0xff]
        %v396 = vld [vmem:[%s175 + $0x120] sm:$0xff]
        %v397 = vld [vmem:[%s175 + $0x128] sm:$0xff]
        %v398 = vld [vmem:[%s175 + $0x130] sm:$0xff]
        %v399 = vld [vmem:[%s175 + $0x138] sm:$0xff]
        %v400 = vld [vmem:[%s175 + $0x140] sm:$0xff]
        %v401 = vld [vmem:[%s175 + $0x148] sm:$0xff]
        %v402 = vld [vmem:[%s175 + $0x150] sm:$0xff]
        %v403 = vld [vmem:[%s175 + $0x158] sm:$0xff]
        %v404 = vld [vmem:[%s175 + $0x160] sm:$0xff]
        %v405 = vld [vmem:[%s175 + $0x168] sm:$0xff]
        %v406 = vld [vmem:[%s175 + $0x170] sm:$0xff]
        %v407 = vld [vmem:[%s175 + $0x178] sm:$0xff]
        %v408 = vld [vmem:[%s175 + $0x180] sm:$0xff]
        %v409 = vld [vmem:[%s175 + $0x188] sm:$0xff]
        %v410 = vld [vmem:[%s175 + $0x190] sm:$0xff]
        %v411 = vld [vmem:[%s175 + $0x198] sm:$0xff]
        %v412 = vld [vmem:[%s175 + $0x1a0] sm:$0xff]
        %v413 = vld [vmem:[%s175 + $0x1a8] sm:$0xff]
        %v414 = vld [vmem:[%s175 + $0x1b0] sm:$0xff]
        %v415 = vld [vmem:[%s175 + $0x1b8] sm:$0xff]
        %v416 = vld [vmem:[%s175 + $0x1c0] sm:$0xff]
        %v417 = vld [vmem:[%s175 + $0x1c8] sm:$0xff]
        %v418 = vld [vmem:[%s175 + $0x1d0] sm:$0xff]
        %v419 = vld [vmem:[%s175 + $0x1d8] sm:$0xff]
        %v420 = vld [vmem:[%s175 + $0x1e0] sm:$0xff]
        %v421 = vld [vmem:[%s175 + $0x1e8] sm:$0xff]
        %v422 = vld [vmem:[%s175 + $0x1f0] sm:$0xff]
        %v423 = vld [vmem:[%s175 + $0x1f8] sm:$0xff]
        %v424 = vunpack.c.l.bf16 %v392
        %v425 = vunpack.c.h.bf16 %v392
        %v426 = vunpack.c.l.bf16 %v393
        %v427 = vunpack.c.h.bf16 %v393
        %v428 = vunpack.c.l.bf16 %v394
        %v429 = vunpack.c.h.bf16 %v394
        %v430 = vunpack.c.l.bf16 %v395
        %v431 = vunpack.c.h.bf16 %v395
        %v432 = vunpack.c.l.bf16 %v396
        %v433 = vunpack.c.h.bf16 %v396
        %v434 = vunpack.c.l.bf16 %v397
        %v435 = vunpack.c.h.bf16 %v397
        %v436 = vunpack.c.l.bf16 %v398
        %v437 = vunpack.c.h.bf16 %v398
        %v438 = vunpack.c.l.bf16 %v399
        %v439 = vunpack.c.h.bf16 %v399
        %v440 = vunpack.c.l.bf16 %v400
        %v441 = vunpack.c.h.bf16 %v400
        %v442 = vunpack.c.l.bf16 %v401
        %v443 = vunpack.c.h.bf16 %v401
        %v444 = vunpack.c.l.bf16 %v402
        %v445 = vunpack.c.h.bf16 %v402
        %v446 = vunpack.c.l.bf16 %v403
        %v447 = vunpack.c.h.bf16 %v403
        %v448 = vunpack.c.l.bf16 %v404
        %v449 = vunpack.c.h.bf16 %v404
        %v450 = vunpack.c.l.bf16 %v405
        %v451 = vunpack.c.h.bf16 %v405
        %v452 = vunpack.c.l.bf16 %v406
        %v453 = vunpack.c.h.bf16 %v406
        %v454 = vunpack.c.l.bf16 %v407
        %v455 = vunpack.c.h.bf16 %v407
        %v456 = vunpack.c.l.bf16 %v408
        %v457 = vunpack.c.h.bf16 %v408
        %v458 = vunpack.c.l.bf16 %v409
        %v459 = vunpack.c.h.bf16 %v409
        %v460 = vunpack.c.l.bf16 %v410
        %v461 = vunpack.c.h.bf16 %v410
        %v462 = vunpack.c.l.bf16 %v411
        %v463 = vunpack.c.h.bf16 %v411
        %v464 = vunpack.c.l.bf16 %v412
        %v465 = vunpack.c.h.bf16 %v412
        %v466 = vunpack.c.l.bf16 %v413
        %v467 = vunpack.c.h.bf16 %v413
        %v468 = vunpack.c.l.bf16 %v414
        %v469 = vunpack.c.h.bf16 %v414
        %v470 = vunpack.c.l.bf16 %v415
        %v471 = vunpack.c.h.bf16 %v415
        %v472 = vunpack.c.l.bf16 %v416
        %v473 = vunpack.c.h.bf16 %v416
        %v474 = vunpack.c.l.bf16 %v417
        %v475 = vunpack.c.h.bf16 %v417
        %v476 = vunpack.c.l.bf16 %v418
        %v477 = vunpack.c.h.bf16 %v418
        %v478 = vunpack.c.l.bf16 %v419
        %v479 = vunpack.c.h.bf16 %v419
        %v480 = vunpack.c.l.bf16 %v420
        %v481 = vunpack.c.h.bf16 %v420
        %v482 = vunpack.c.l.bf16 %v421
        %v483 = vunpack.c.h.bf16 %v421
        %v484 = vunpack.c.l.bf16 %v422
        %v485 = vunpack.c.h.bf16 %v422
        %v486 = vunpack.c.l.bf16 %v423
        %v487 = vunpack.c.h.bf16 %v423
        %s488 = sadd.s32 %s204, 1
        %s489 = smul.u32 %s488, 2
        %s490 = smul.addr %s489, 8
        %s491 = scalar_lea.vmem [#allocation3], %s490
        %v492 = vld [vmem:[%s491] sm:$0xff]
        %v493 = vld [vmem:[%s491 + $0x8] sm:$0xff]
        %v494 = vld [vmem:[#allocation2] sm:$0xff]
        %v495 = vld [vmem:[#allocation2 + $0x8] sm:$0xff]
        %496 = vmatpush.msra.mxu0 %v454
        %497 = vmatpush.msra.mxu0 %v452
        %498 = vmatpush.msra.mxu0 %v450
        %499 = vmatpush.msra.mxu0 %v448
        %500 = vmatpush.msra.mxu0 %v446
        %501 = vmatpush.msra.mxu0 %v444
        %502 = vmatpush.msra.mxu0 %v442
        %503 = vmatpush.msra.mxu0 %v440
        %504 = vmatpush.msra.mxu0 %v438
        %505 = vmatpush.msra.mxu0 %v436
        %506 = vmatpush.msra.mxu0 %v434
        %507 = vmatpush.msra.mxu0 %v432
        %508 = vmatpush.msra.mxu0 %v430
        %509 = vmatpush.msra.mxu0 %v428
        %510 = vmatpush.msra.mxu0 %v426
        %511 = vmatpush.msra.mxu0 %v424
        %512 = vmatmul.f32.gmra.mxu0 %v492
        %v513 = vpop.f32.mrf.mxu0
        %v514 = vadd.f32 0.0, %v513
        %515 = vdwg.mxu0
        %516 = vmatpush.msra.mxu0 %v486
        %517 = vmatpush.msra.mxu0 %v484
        %518 = vmatpush.msra.mxu0 %v482
        %519 = vmatpush.msra.mxu0 %v480
        %520 = vmatpush.msra.mxu0 %v478
        %521 = vmatpush.msra.mxu0 %v476
        %522 = vmatpush.msra.mxu0 %v474
        %523 = vmatpush.msra.mxu0 %v472
        %524 = vmatpush.msra.mxu0 %v470
        %525 = vmatpush.msra.mxu0 %v468
        %526 = vmatpush.msra.mxu0 %v466
        %527 = vmatpush.msra.mxu0 %v464
        %528 = vmatpush.msra.mxu0 %v462
        %529 = vmatpush.msra.mxu0 %v460
        %530 = vmatpush.msra.mxu0 %v458
        %531 = vmatpush.msra.mxu0 %v456
        %532 = vmatmul.f32.gmra.mxu0 %v493
        %v533 = vpop.f32.mrf.mxu0
        %v534 = vadd.f32 %v514, %v533
        %535 = vdwg.mxu0
        %536 = vmatpush.msra.mxu0 %v455
        %537 = vmatpush.msra.mxu0 %v453
        %538 = vmatpush.msra.mxu0 %v451
        %539 = vmatpush.msra.mxu0 %v449
        %540 = vmatpush.msra.mxu0 %v447
        %541 = vmatpush.msra.mxu0 %v445
        %542 = vmatpush.msra.mxu0 %v443
        %543 = vmatpush.msra.mxu0 %v441
        %544 = vmatpush.msra.mxu0 %v439
        %545 = vmatpush.msra.mxu0 %v437
        %546 = vmatpush.msra.mxu0 %v435
        %547 = vmatpush.msra.mxu0 %v433
        %548 = vmatpush.msra.mxu0 %v431
        %549 = vmatpush.msra.mxu0 %v429
        %550 = vmatpush.msra.mxu0 %v427
        %551 = vmatpush.msra.mxu0 %v425
        %552 = vmatmul.f32.gmra.mxu0 %v492
        %v553 = vpop.f32.mrf.mxu0
        %v554 = vadd.f32 0.0, %v553
        %555 = vdwg.mxu0
        %556 = vmatpush.msra.mxu0 %v487
        %557 = vmatpush.msra.mxu0 %v485
        %558 = vmatpush.msra.mxu0 %v483
        %559 = vmatpush.msra.mxu0 %v481
        %560 = vmatpush.msra.mxu0 %v479
        %561 = vmatpush.msra.mxu0 %v477
        %562 = vmatpush.msra.mxu0 %v475
        %563 = vmatpush.msra.mxu0 %v473
        %564 = vmatpush.msra.mxu0 %v471
        %565 = vmatpush.msra.mxu0 %v469
        %566 = vmatpush.msra.mxu0 %v467
        %567 = vmatpush.msra.mxu0 %v465
        %568 = vmatpush.msra.mxu0 %v463
        %569 = vmatpush.msra.mxu0 %v461
        %570 = vmatpush.msra.mxu0 %v459
        %571 = vmatpush.msra.mxu0 %v457
        %572 = vmatmul.f32.gmra.mxu0 %v493
        %v573 = vpop.f32.mrf.mxu0
        %v574 = vadd.f32 %v554, %v573
        %575 = vdwg.mxu0
        %v576 = vadd.f32 %v494, %v534
        %v577 = vadd.f32 %v495, %v574
        %578 = vst [vmem:[#allocation2] sm:$0xff] %v576
        %579 = vst [vmem:[#allocation2 + $0x8] sm:$0xff] %v577
        // Predicated region
        $region41: #{tpu_custom_call.1} parent=27 // pred_check
          %p580 = pneg %p198
        $region42: #{tpu_custom_call.1} parent=27 // pred_check_branch
          %582 = sbr.rel (%p580) target = $region44
        $region43: #{tpu_custom_call.1} parent=27 // pred_region
          %v583 = vld [vmem:[#allocation2] sm:$0xff]
          %v584 = vld [vmem:[#allocation2 + $0x8] sm:$0xff]
          %585 = vst [vmem:[%s196] sm:$0xff] %v583
          %586 = vst [vmem:[%s196 + $0x8] sm:$0xff] %v584
        $region44: #{tpu_custom_call.1} parent=27 // pred_fallthru
          _
        %s587 = sand.u32 %s89, 1
        %s588 = scalar_lea.sflag [#allocation5], %s587
        %s589 = sand.u32 %s89, 1
        %s590 = smul.addr %s589, 16
        %s591 = scalar_lea.vmem [#allocation8], %s590
        // Predicated region
        $region45: #{tpu_custom_call.1} parent=27 // pred_check
          %p592 = pneg %p99
        $region46: #{tpu_custom_call.1} parent=27 // pred_check_branch
          %594 = sbr.rel (%p592) target = $region48
        $region47: #{tpu_custom_call.1} parent=27 // pred_region
          %s595 = smul.u32 2, %s24
          %597 = vsyncadd %s588, 0
          %s598 = smul.addr %s595, 8
          %s599 = scalar_lea.hbm %s2, %s598
          %s601 = sshll.u32 %s591, 4
          %s602 = int_to_ptr.vmem [resolvable:$true] %s601
          %s603 = sshll.u32 %s599, 4
          %s604 = int_to_ptr.hbm [resolvable:$true] %s603
          %606 = dma.vmem_to_hbm [thread:$0]  %s602, 256, %s604, %s588
        $region48: #{tpu_custom_call.1} parent=27 // pred_fallthru
          _
      $region28: #{tpu_custom_call.1} parent=5 // pred_fallthru
        _
      %p607 = scmp.le.s32.totalorder 2, %s15
      // Predicated region
      $region49: #{tpu_custom_call.1} parent=5 // pred_check
        %p608 = pneg %p607
      $region50: #{tpu_custom_call.1} parent=5 // pred_check_branch
        %610 = sbr.rel (%p608) target = $region52
      $region51: #{tpu_custom_call.1} parent=5 // pred_region
        %s611 = ssub.s32 %s15, 2
        // Predicated region
        $region53: #{tpu_custom_call.1} parent=51 // pred_check
          %p612 = pneg %p105
        $region54: #{tpu_custom_call.1} parent=51 // pred_check_branch
          %614 = sbr.rel (%p612) target = $region56
        $region55: #{tpu_custom_call.1} parent=51 // pred_region
          %s615 = sand.u32 %s90, 1
          %s616 = scalar_lea.sflag [#allocation5], %s615
          %s617 = sand.u32 %s90, 1
          %s618 = smul.addr %s617, 16
          %s619 = scalar_lea.vmem [#allocation8], %s618
          %621 = dma.done %s616, 256
        $region56: #{tpu_custom_call.1} parent=51 // pred_fallthru
          _
      $region52: #{tpu_custom_call.1} parent=5 // pred_fallthru
        _
    $region6: #{tpu_custom_call.1} parent=1 // loop_footer
      %s19 = sadd.s32 1, %s15
    $region7: #{tpu_custom_call.1} parent=1 // loop_footer_branch
      %14 = sbr.rel target = $region3
    $region8: #{tpu_custom_call.1} parent=1 // loop_exit
      _
    %622 = vsyncpa [#allocation4], 1
    %s623 = scalar_lea.sflag [#allocation4], 1
    %624 = vsyncpa %s623, 1
    %625 = vsyncpa [#allocation7], 1
    %s626 = scalar_lea.sflag [#allocation7], 1
    %627 = vsyncpa %s626, 1
    %628 = vsyncpa [#allocation5], 1
    %s629 = scalar_lea.sflag [#allocation5], 1
    %630 = vsyncpa %s629, 1

</llo_original>
